<compile_context>
chip_gen: v6e
topology: v6e:2x2x1
jax: 0.10.0
libtpu: 0.0.40
codegen_flags: <defaults>
</compile_context>

<pallas_src>
import math
import functools

import jax
import jax.numpy as jnp
from jax.experimental import pallas as pl
from jax.experimental.pallas import tpu as pltpu


def _baseconv1d_kernel(x_ref, w_ref, b_ref, o_ref, xcol_ref, *,
                       kernel_size, stride, padding):
    """One grid step processes Bt batch elements.

    x_ref    : (Bt, L, C_in)          input block ('b l c' layout, original dtype)
    w_ref    : (K, C_in, 2*C_out)     fused [real | imag] weights, compute dtype
    b_ref    : (1, 2*C_out)           fused [real | imag] bias, f32
    o_ref    : (Bt, L_out, C_out)     unpadded channels-last output block
    xcol_ref : (K, Bt*L_out, C_in)    im2col staging scratch, compute dtype
    """
    bt, l_in, c_in = x_ref.shape
    l_out, c_out = o_ref.shape[1], o_ref.shape[2]
    cdt = xcol_ref.dtype

    # --- stage im2col slabs: xcol[k, b*L_out + t, :] = x_padded[b, t*stride + k, :] ---
    # All offsets/lengths are Python ints -> fully static slices.  The whole scratch is
    # NOT memset; only halo rows (input index out of range) are zero-filled.
    for b in range(bt):                              # Bt is small & static -> unrolled
        row0 = b * l_out
        for k in range(kernel_size):
            # output positions t whose tap-k input row r = t*stride + k - padding is valid
            t_lo = max(0, -((k - padding) // stride))            # ceil((padding-k)/stride)
            t_hi = min(l_out - 1, (l_in - 1 + padding - k) // stride)
            if t_lo > t_hi:                                      # tap lies fully in the halo
                xcol_ref[k, pl.ds(row0, l_out), :] = jnp.zeros((l_out, c_in), cdt)
                continue
            if t_lo > 0:                                         # head halo rows
                xcol_ref[k, pl.ds(row0, t_lo), :] = jnp.zeros((t_lo, c_in), cdt)
            if t_hi < l_out - 1:                                 # tail halo rows
                n_tail = l_out - 1 - t_hi
                xcol_ref[k, pl.ds(row0 + t_hi + 1, n_tail), :] = jnp.zeros((n_tail, c_in), cdt)
            n_valid = t_hi - t_lo + 1
            r0 = t_lo * stride + k - padding
            if stride == 1:
                win = x_ref[b, pl.ds(r0, n_valid), :]
            else:                                                # strided sublane read
                win = x_ref[b, pl.ds(r0, n_valid, stride=stride), :]
            xcol_ref[k, pl.ds(row0 + t_lo, n_valid), :] = win.astype(cdt)

    # --- K accumulating MXU dots over all Bt elements & both phases (f32 accumulation) ---
    # (For very small C_in a VPU broadcast-MAC could also be used; the MXU dot keeps the
    #  code shape-generic and is what large-C_in configurations want.)
    acc = jnp.dot(xcol_ref[0], w_ref[0], preferred_element_type=jnp.float32)
    for k in range(1, kernel_size):
        acc = acc + jnp.dot(xcol_ref[k], w_ref[k], preferred_element_type=jnp.float32)
    acc = acc + b_ref[...]                           # (Bt*L_out, 2*C_out), f32

    real = acc[:, :c_out]
    imag = acc[:, c_out:]
    mag = jnp.sqrt(real * real + imag * imag)        # f32 epilogue (cheap; v5e-friendly)

    # --- store: exact C_out channels (no 128-lane padding), one slab per batch element ---
    for b in range(bt):
        o_ref[b] = mag[b * l_out:(b + 1) * l_out, :].astype(o_ref.dtype)


def base_conv1d(x, weight, bias, *, stride=1, padding=0,
                compute_dtype=jnp.bfloat16, out_dtype=None, channels_last=False):
    """Pallas implementation of BaseConv1d.forward.

    x      : (B, L, C_in)        -- 'b l c', same layout as the PyTorch module input
    weight : (2, C_out, C_in, K) -- same layout as the PyTorch parameter
    bias   : (2, C_out) or None
    returns: (B, C_out, L_out)   -- PyTorch layout (or (B, L_out, C_out) if channels_last)
    """
    B, L, C_in = x.shape
    n_phases, C_out, w_cin, K = weight.shape
    assert n_phases == 2 and w_cin == C_in
    L_out = (L + 2 * padding - K) // stride + 1
    assert L_out >= 1, "invalid conv geometry"
    out_dtype = x.dtype if out_dtype is None else out_dtype

    # Fused [real | imag] weights: (K, C_in, 2*C_out) — one matmul RHS slab per tap.
    w = jnp.transpose(weight, (3, 2, 0, 1)).reshape(K, C_in, 2 * C_out).astype(compute_dtype)
    if bias is None:
        b = jnp.zeros((1, 2 * C_out), jnp.float32)
    else:
        b = bias.astype(jnp.float32).reshape(1, 2 * C_out)

    # --- choose how many batch elements to fold per grid step (fills the MXU M dim) ---
    xb = jnp.dtype(x.dtype).itemsize
    ob = jnp.dtype(out_dtype).itemsize
    cb = jnp.dtype(compute_dtype).itemsize
    per_elem = (2 * L * C_in * xb                 # x block (double-buffered)
                + 2 * L_out * C_out * ob          # out block (double-buffered)
                + K * L_out * C_in * cb           # im2col staging scratch
                + 6 * L_out * 2 * C_out * 4)      # f32 acc/mag live values (headroom)
    const_bytes = 2 * (K * C_in * 2 * C_out * cb + 2 * C_out * 4)   # weights + bias
    vmem_budget = 16 * 1024 * 1024                # keeps well inside v7x's 64 MiB
    target_m = 512

    divisors = [d for d in range(1, B + 1) if B % d == 0]
    Bt = 1
    for d in divisors:
        if d > 1 and const_bytes + d * per_elem > vmem_budget:
            break
        Bt = d
        if d * L_out >= target_m:
            break
    # v7x has two TensorCores: keep >= 2 parallel grid steps when that does not shrink
    # the matmul M dimension below ~256.
    if B // Bt == 1:
        for d in reversed(divisors):
            if d < Bt and B // d >= 2 and d * L_out >= min(256, Bt * L_out):
                Bt = d
                break

    kern = functools.partial(_baseconv1d_kernel,
                             kernel_size=K, stride=stride, padding=padding)

    out = pl.pallas_call(
        kern,
        out_shape=jax.ShapeDtypeStruct((B, L_out, C_out), out_dtype),
        grid_spec=pltpu.PrefetchScalarGridSpec(
            num_scalar_prefetch=0,
            grid=(B // Bt,),
            in_specs=[
                pl.BlockSpec((Bt, L, C_in), lambda i: (i, 0, 0)),
                pl.BlockSpec((K, C_in, 2 * C_out), lambda i: (0, 0, 0)),  # constant weights
                pl.BlockSpec((1, 2 * C_out), lambda i: (0, 0)),           # constant bias
            ],
            out_specs=pl.BlockSpec((Bt, L_out, C_out), lambda i: (i, 0, 0)),
            scratch_shapes=[pltpu.VMEM((K, Bt * L_out, C_in), compute_dtype)],
        ),
        compiler_params=pltpu.CompilerParams(
            dimension_semantics=("parallel",),
            vmem_limit_bytes=40 * 1024 * 1024,
        ),
    )(x, w, b)

    if channels_last:
        return out                      # (B, L_out, C_out) — zero extra HBM passes
    # Match the PyTorch module's (B, C_out, L_out) layout.  This is one small XLA
    # transpose over the *unpadded* output (vs. the previous 128-lane padded writeback).
    return jnp.swapaxes(out, 1, 2)


def _reference_forward(x, weight, bias, *, stride, padding):
    """Pure-JAX f32 reference mirroring the PyTorch forward (for validation)."""
    xt = jnp.transpose(x, (0, 2, 1))  # 'b l c' -> 'b c l'
    results = []
    for p in range(2):
        y = jax.lax.conv_general_dilated(
            xt, weight[p],
            window_strides=(stride,),
            padding=[(padding, padding)],
            dimension_numbers=("NCH", "OIH", "NCH"),
        )
        if bias is not None:
            y = y + bias[p][None, :, None]
        results.append(y)
    return jnp.sqrt(results[0] ** 2 + results[1] ** 2)


def _init_params(key, in_channels, out_channels, kernel_size):
    """Deterministic re-implementation of the module's kaiming_uniform_(a=sqrt(5)) init."""
    fan_in = in_channels * kernel_size
    bound = 1.0 / math.sqrt(fan_in)   # kaiming_uniform with a=sqrt(5) -> 1/sqrt(fan_in)
    kw, kb = jax.random.split(key)
    weight = jax.random.uniform(
        kw, (2, out_channels, in_channels, kernel_size),
        minval=-bound, maxval=bound, dtype=jnp.float32)
    bias = jax.random.uniform(
        kb, (2, out_channels), minval=-bound, maxval=bound, dtype=jnp.float32)
    return weight, bias


if __name__ == "__main__":
    # Small shapes consistent with the module: batch=2, seq len=16, in_channels=4.
    B, L, C_in = 2, 16, 4
    C_out, K, stride, padding = 8, 3, 1, 1

    key = jax.random.PRNGKey(0)
    kx, kp = jax.random.split(key)
    x = jax.random.normal(kx, (B, L, C_in), dtype=jnp.float32)  # 'b l c' input
    weight, bias = _init_params(kp, C_in, C_out, K)

    out = base_conv1d(x, weight, bias, stride=stride, padding=padding)
    out = jax.block_until_ready(out)

    ref = _reference_forward(x, weight, bias, stride=stride, padding=padding)
    L_out = (L + 2 * padding - K) // stride + 1
    assert out.shape == ref.shape == (B, C_out, L_out)
    # bf16 MXU operands with f32 accumulation -> compare against the f32 reference with
    # bf16-appropriate tolerance.
    max_err = float(jnp.max(jnp.abs(out - ref)))
    assert jnp.allclose(out, ref, rtol=5e-2, atol=2e-2), max_err

    print("KERNEL_OK")
</pallas_src>

<mosaic_0001>
module attributes {stable_mosaic.version = 11 : i64} {
  func.func @_baseconv1d_kernel(%arg0: i32, %arg1: memref<2x16x4xf32, #tpu.memory_space<vmem>>, %arg2: memref<3x4x16xbf16, #tpu.memory_space<vmem>>, %arg3: memref<1x16xf32, #tpu.memory_space<vmem>>, %arg4: memref<2x16x8xf32, #tpu.memory_space<vmem>>, %arg5: memref<3x32x4xbf16, #tpu.memory_space<vmem>>) attributes {dimension_semantics = [#tpu.dimension_semantics<parallel>], iteration_bounds = array<i64: 1>, scalar_prefetch = 0 : i64, scratch_operands = 1 : i64, tpu.core_type = #tpu.core_type<tc>, window_params = [{transform_indices = @transform_0, window_bounds = array<i64: 2, 16, 4>}, {pipeline_mode = #tpu.pipeline_mode<synchronous>, transform_indices = @transform_1, window_bounds = array<i64: 3, 4, 16>}, {pipeline_mode = #tpu.pipeline_mode<synchronous>, transform_indices = @transform_2, window_bounds = array<i64: 1, 16>}, {transform_indices = @transform_3, window_bounds = array<i64: 2, 16, 8>}]} {
    %cst = arith.constant 0.000000e+00 : bf16
    %0 = vector.broadcast %cst : bf16 to vector<1x4xbf16>
    %c0 = arith.constant 0 : index
    %c0_0 = arith.constant 0 : index
    %c0_1 = arith.constant 0 : index
    %1 = vector.load %arg5[%c0, %c0_0, %c0_1] : memref<3x32x4xbf16, #tpu.memory_space<vmem>>, vector<1x1x4xbf16>
    %2 = vector.shape_cast %1 : vector<1x1x4xbf16> to vector<1x4xbf16>
    %3 = vector.shape_cast %0 : vector<1x4xbf16> to vector<1x1x4xbf16>
    tpu.vector_store %arg5[%c0, %c0_0, %c0_1], %3 {strides = array<i32>} : memref<3x32x4xbf16, #tpu.memory_space<vmem>>, vector<1x1x4xbf16>,
    %c0_2 = arith.constant 0 : index
    %c0_3 = arith.constant 0 : index
    %c0_4 = arith.constant 0 : index
    %4 = vector.load %arg1[%c0_2, %c0_3, %c0_4] : memref<2x16x4xf32, #tpu.memory_space<vmem>>, vector<1x15x4xf32>
    %5 = vector.shape_cast %4 : vector<1x15x4xf32> to vector<15x4xf32>
    %6 = arith.truncf %5 : vector<15x4xf32> to vector<15x4xbf16>
    %c0_5 = arith.constant 0 : index
    %c1 = arith.constant 1 : index
    %c0_6 = arith.constant 0 : index
    %7 = vector.load %arg5[%c0_5, %c1, %c0_6] : memref<3x32x4xbf16, #tpu.memory_space<vmem>>, vector<1x15x4xbf16>
    %8 = vector.shape_cast %7 : vector<1x15x4xbf16> to vector<15x4xbf16>
    %9 = vector.shape_cast %6 : vector<15x4xbf16> to vector<1x15x4xbf16>
    tpu.vector_store %arg5[%c0_5, %c1, %c0_6], %9 {strides = array<i32>} : memref<3x32x4xbf16, #tpu.memory_space<vmem>>, vector<1x15x4xbf16>,
    %c0_7 = arith.constant 0 : index
    %c0_8 = arith.constant 0 : index
    %c0_9 = arith.constant 0 : index
    %10 = vector.load %arg1[%c0_7, %c0_8, %c0_9] : memref<2x16x4xf32, #tpu.memory_space<vmem>>, vector<1x16x4xf32>
    %11 = vector.shape_cast %10 : vector<1x16x4xf32> to vector<16x4xf32>
    %12 = arith.truncf %11 : vector<16x4xf32> to vector<16x4xbf16>
    %c1_10 = arith.constant 1 : index
    %c0_11 = arith.constant 0 : index
    %c0_12 = arith.constant 0 : index
    %13 = vector.load %arg5[%c1_10, %c0_11, %c0_12] : memref<3x32x4xbf16, #tpu.memory_space<vmem>>, vector<1x16x4xbf16>
    %14 = vector.shape_cast %13 : vector<1x16x4xbf16> to vector<16x4xbf16>
    %15 = vector.shape_cast %12 : vector<16x4xbf16> to vector<1x16x4xbf16>
    tpu.vector_store %arg5[%c1_10, %c0_11, %c0_12], %15 {strides = array<i32>} : memref<3x32x4xbf16, #tpu.memory_space<vmem>>, vector<1x16x4xbf16>,
    %cst_13 = arith.constant 0.000000e+00 : bf16
    %16 = vector.broadcast %cst_13 : bf16 to vector<1x4xbf16>
    %c2 = arith.constant 2 : index
    %c15 = arith.constant 15 : index
    %c0_14 = arith.constant 0 : index
    %17 = vector.load %arg5[%c2, %c15, %c0_14] : memref<3x32x4xbf16, #tpu.memory_space<vmem>>, vector<1x1x4xbf16>
    %18 = vector.shape_cast %17 : vector<1x1x4xbf16> to vector<1x4xbf16>
    %19 = vector.shape_cast %16 : vector<1x4xbf16> to vector<1x1x4xbf16>
    tpu.vector_store %arg5[%c2, %c15, %c0_14], %19 {strides = array<i32>} : memref<3x32x4xbf16, #tpu.memory_space<vmem>>, vector<1x1x4xbf16>,
    %c0_15 = arith.constant 0 : index
    %c1_16 = arith.constant 1 : index
    %c0_17 = arith.constant 0 : index
    %20 = vector.load %arg1[%c0_15, %c1_16, %c0_17] : memref<2x16x4xf32, #tpu.memory_space<vmem>>, vector<1x15x4xf32>
    %21 = vector.shape_cast %20 : vector<1x15x4xf32> to vector<15x4xf32>
    %22 = arith.truncf %21 : vector<15x4xf32> to vector<15x4xbf16>
    %c2_18 = arith.constant 2 : index
    %c0_19 = arith.constant 0 : index
    %c0_20 = arith.constant 0 : index
    %23 = vector.load %arg5[%c2_18, %c0_19, %c0_20] : memref<3x32x4xbf16, #tpu.memory_space<vmem>>, vector<1x15x4xbf16>
    %24 = vector.shape_cast %23 : vector<1x15x4xbf16> to vector<15x4xbf16>
    %25 = vector.shape_cast %22 : vector<15x4xbf16> to vector<1x15x4xbf16>
    tpu.vector_store %arg5[%c2_18, %c0_19, %c0_20], %25 {strides = array<i32>} : memref<3x32x4xbf16, #tpu.memory_space<vmem>>, vector<1x15x4xbf16>,
    %cst_21 = arith.constant 0.000000e+00 : bf16
    %26 = vector.broadcast %cst_21 : bf16 to vector<1x4xbf16>
    %c0_22 = arith.constant 0 : index
    %c16 = arith.constant 16 : index
    %c0_23 = arith.constant 0 : index
    %27 = vector.load %arg5[%c0_22, %c16, %c0_23] : memref<3x32x4xbf16, #tpu.memory_space<vmem>>, vector<1x1x4xbf16>
    %28 = vector.shape_cast %27 : vector<1x1x4xbf16> to vector<1x4xbf16>
    %29 = vector.shape_cast %26 : vector<1x4xbf16> to vector<1x1x4xbf16>
    tpu.vector_store %arg5[%c0_22, %c16, %c0_23], %29 {strides = array<i32>} : memref<3x32x4xbf16, #tpu.memory_space<vmem>>, vector<1x1x4xbf16>,
    %c1_24 = arith.constant 1 : index
    %c0_25 = arith.constant 0 : index
    %c0_26 = arith.constant 0 : index
    %30 = vector.load %arg1[%c1_24, %c0_25, %c0_26] : memref<2x16x4xf32, #tpu.memory_space<vmem>>, vector<1x15x4xf32>
    %31 = vector.shape_cast %30 : vector<1x15x4xf32> to vector<15x4xf32>
    %32 = arith.truncf %31 : vector<15x4xf32> to vector<15x4xbf16>
    %c0_27 = arith.constant 0 : index
    %c17 = arith.constant 17 : index
    %c0_28 = arith.constant 0 : index
    %33 = vector.load %arg5[%c0_27, %c17, %c0_28] : memref<3x32x4xbf16, #tpu.memory_space<vmem>>, vector<1x15x4xbf16>
    %34 = vector.shape_cast %33 : vector<1x15x4xbf16> to vector<15x4xbf16>
    %35 = vector.shape_cast %32 : vector<15x4xbf16> to vector<1x15x4xbf16>
    tpu.vector_store %arg5[%c0_27, %c17, %c0_28], %35 {strides = array<i32>} : memref<3x32x4xbf16, #tpu.memory_space<vmem>>, vector<1x15x4xbf16>,
    %c1_29 = arith.constant 1 : index
    %c0_30 = arith.constant 0 : index
    %c0_31 = arith.constant 0 : index
    %36 = vector.load %arg1[%c1_29, %c0_30, %c0_31] : memref<2x16x4xf32, #tpu.memory_space<vmem>>, vector<1x16x4xf32>
    %37 = vector.shape_cast %36 : vector<1x16x4xf32> to vector<16x4xf32>
    %38 = arith.truncf %37 : vector<16x4xf32> to vector<16x4xbf16>
    %c1_32 = arith.constant 1 : index
    %c16_33 = arith.constant 16 : index
    %c0_34 = arith.constant 0 : index
    %39 = vector.load %arg5[%c1_32, %c16_33, %c0_34] : memref<3x32x4xbf16, #tpu.memory_space<vmem>>, vector<1x16x4xbf16>
    %40 = vector.shape_cast %39 : vector<1x16x4xbf16> to vector<16x4xbf16>
    %41 = vector.shape_cast %38 : vector<16x4xbf16> to vector<1x16x4xbf16>
    tpu.vector_store %arg5[%c1_32, %c16_33, %c0_34], %41 {strides = array<i32>} : memref<3x32x4xbf16, #tpu.memory_space<vmem>>, vector<1x16x4xbf16>,
    %cst_35 = arith.constant 0.000000e+00 : bf16
    %42 = vector.broadcast %cst_35 : bf16 to vector<1x4xbf16>
    %c2_36 = arith.constant 2 : index
    %c31 = arith.constant 31 : index
    %c0_37 = arith.constant 0 : index
    %43 = vector.load %arg5[%c2_36, %c31, %c0_37] : memref<3x32x4xbf16, #tpu.memory_space<vmem>>, vector<1x1x4xbf16>
    %44 = vector.shape_cast %43 : vector<1x1x4xbf16> to vector<1x4xbf16>
    %45 = vector.shape_cast %42 : vector<1x4xbf16> to vector<1x1x4xbf16>
    tpu.vector_store %arg5[%c2_36, %c31, %c0_37], %45 {strides = array<i32>} : memref<3x32x4xbf16, #tpu.memory_space<vmem>>, vector<1x1x4xbf16>,
    %c1_38 = arith.constant 1 : index
    %c1_39 = arith.constant 1 : index
    %c0_40 = arith.constant 0 : index
    %46 = vector.load %arg1[%c1_38, %c1_39, %c0_40] : memref<2x16x4xf32, #tpu.memory_space<vmem>>, vector<1x15x4xf32>
    %47 = vector.shape_cast %46 : vector<1x15x4xf32> to vector<15x4xf32>
    %48 = arith.truncf %47 : vector<15x4xf32> to vector<15x4xbf16>
    %c2_41 = arith.constant 2 : index
    %c16_42 = arith.constant 16 : index
    %c0_43 = arith.constant 0 : index
    %49 = vector.load %arg5[%c2_41, %c16_42, %c0_43] : memref<3x32x4xbf16, #tpu.memory_space<vmem>>, vector<1x15x4xbf16>
    %50 = vector.shape_cast %49 : vector<1x15x4xbf16> to vector<15x4xbf16>
    %51 = vector.shape_cast %48 : vector<15x4xbf16> to vector<1x15x4xbf16>
    tpu.vector_store %arg5[%c2_41, %c16_42, %c0_43], %51 {strides = array<i32>} : memref<3x32x4xbf16, #tpu.memory_space<vmem>>, vector<1x15x4xbf16>,
    %c0_44 = arith.constant 0 : index
    %c0_45 = arith.constant 0 : index
    %c0_46 = arith.constant 0 : index
    %52 = vector.load %arg5[%c0_44, %c0_45, %c0_46] : memref<3x32x4xbf16, #tpu.memory_space<vmem>>, vector<1x32x4xbf16>
    %53 = vector.shape_cast %52 : vector<1x32x4xbf16> to vector<32x4xbf16>
    %c0_47 = arith.constant 0 : index
    %c0_48 = arith.constant 0 : index
    %c0_49 = arith.constant 0 : index
    %54 = vector.load %arg2[%c0_47, %c0_48, %c0_49] : memref<3x4x16xbf16, #tpu.memory_space<vmem>>, vector<1x4x16xbf16>
    %55 = vector.shape_cast %54 : vector<1x4x16xbf16> to vector<4x16xbf16>
    %cst_50 = arith.constant dense<0.000000e+00> : vector<32x16xf32>
    %56 = tpu.matmul %53, %55, %cst_50 {dimension_numbers = #tpu.dot_dimension_numbers<[1], [0], [0], [1], [0, 0, 1, 1], [], []>} : vector<32x4xbf16>, vector<4x16xbf16>, vector<32x16xf32> -> vector<32x16xf32>
    %c1_51 = arith.constant 1 : index
    %c0_52 = arith.constant 0 : index
    %c0_53 = arith.constant 0 : index
    %57 = vector.load %arg5[%c1_51, %c0_52, %c0_53] : memref<3x32x4xbf16, #tpu.memory_space<vmem>>, vector<1x32x4xbf16>
    %58 = vector.shape_cast %57 : vector<1x32x4xbf16> to vector<32x4xbf16>
    %c1_54 = arith.constant 1 : index
    %c0_55 = arith.constant 0 : index
    %c0_56 = arith.constant 0 : index
    %59 = vector.load %arg2[%c1_54, %c0_55, %c0_56] : memref<3x4x16xbf16, #tpu.memory_space<vmem>>, vector<1x4x16xbf16>
    %60 = vector.shape_cast %59 : vector<1x4x16xbf16> to vector<4x16xbf16>
    %cst_57 = arith.constant dense<0.000000e+00> : vector<32x16xf32>
    %61 = tpu.matmul %58, %60, %cst_57 {dimension_numbers = #tpu.dot_dimension_numbers<[1], [0], [0], [1], [0, 0, 1, 1], [], []>} : vector<32x4xbf16>, vector<4x16xbf16>, vector<32x16xf32> -> vector<32x16xf32>
    %62 = arith.addf %56, %61 : vector<32x16xf32>
    %c2_58 = arith.constant 2 : index
    %c0_59 = arith.constant 0 : index
    %c0_60 = arith.constant 0 : index
    %63 = vector.load %arg5[%c2_58, %c0_59, %c0_60] : memref<3x32x4xbf16, #tpu.memory_space<vmem>>, vector<1x32x4xbf16>
    %64 = vector.shape_cast %63 : vector<1x32x4xbf16> to vector<32x4xbf16>
    %c2_61 = arith.constant 2 : index
    %c0_62 = arith.constant 0 : index
    %c0_63 = arith.constant 0 : index
    %65 = vector.load %arg2[%c2_61, %c0_62, %c0_63] : memref<3x4x16xbf16, #tpu.memory_space<vmem>>, vector<1x4x16xbf16>
    %66 = vector.shape_cast %65 : vector<1x4x16xbf16> to vector<4x16xbf16>
    %cst_64 = arith.constant dense<0.000000e+00> : vector<32x16xf32>
    %67 = tpu.matmul %64, %66, %cst_64 {dimension_numbers = #tpu.dot_dimension_numbers<[1], [0], [0], [1], [0, 0, 1, 1], [], []>} : vector<32x4xbf16>, vector<4x16xbf16>, vector<32x16xf32> -> vector<32x16xf32>
    %68 = arith.addf %62, %67 : vector<32x16xf32>
    %c0_65 = arith.constant 0 : index
    %c0_66 = arith.constant 0 : index
    %69 = vector.load %arg3[%c0_65, %c0_66] : memref<1x16xf32, #tpu.memory_space<vmem>>, vector<1x16xf32>
    %70 = vector.broadcast %69 : vector<1x16xf32> to vector<32x16xf32>
    %71 = arith.addf %68, %70 : vector<32x16xf32>
    %72 = vector.extract_strided_slice %71 {offsets = [0, 0], sizes = [32, 8], strides = [1, 1]} : vector<32x16xf32> to vector<32x8xf32>
    %73 = vector.extract_strided_slice %71 {offsets = [0, 8], sizes = [32, 8], strides = [1, 1]} : vector<32x16xf32> to vector<32x8xf32>
    %74 = arith.mulf %72, %72 : vector<32x8xf32>
    %75 = arith.mulf %73, %73 : vector<32x8xf32>
    %76 = arith.addf %74, %75 : vector<32x8xf32>
    %77 = math.sqrt %76 : vector<32x8xf32>
    %78 = vector.extract_strided_slice %77 {offsets = [0, 0], sizes = [16, 8], strides = [1, 1]} : vector<32x8xf32> to vector<16x8xf32>
    %c0_67 = arith.constant 0 : index
    %c0_68 = arith.constant 0 : index
    %c0_69 = arith.constant 0 : index
    %79 = vector.load %arg4[%c0_67, %c0_68, %c0_69] : memref<2x16x8xf32, #tpu.memory_space<vmem>>, vector<1x16x8xf32>
    %80 = vector.shape_cast %79 : vector<1x16x8xf32> to vector<16x8xf32>
    %81 = vector.shape_cast %78 : vector<16x8xf32> to vector<1x16x8xf32>
    tpu.vector_store %arg4[%c0_67, %c0_68, %c0_69], %81 {strides = array<i32>} : memref<2x16x8xf32, #tpu.memory_space<vmem>>, vector<1x16x8xf32>,
    %82 = vector.extract_strided_slice %77 {offsets = [16, 0], sizes = [16, 8], strides = [1, 1]} : vector<32x8xf32> to vector<16x8xf32>
    %c1_70 = arith.constant 1 : index
    %c0_71 = arith.constant 0 : index
    %c0_72 = arith.constant 0 : index
    %83 = vector.load %arg4[%c1_70, %c0_71, %c0_72] : memref<2x16x8xf32, #tpu.memory_space<vmem>>, vector<1x16x8xf32>
    %84 = vector.shape_cast %83 : vector<1x16x8xf32> to vector<16x8xf32>
    %85 = vector.shape_cast %82 : vector<16x8xf32> to vector<1x16x8xf32>
    tpu.vector_store %arg4[%c1_70, %c0_71, %c0_72], %85 {strides = array<i32>} : memref<2x16x8xf32, #tpu.memory_space<vmem>>, vector<1x16x8xf32>,
    return
  }
  func.func @transform_0(%arg0: i32) -> (i32, i32, i32) {
    %c0_i32 = arith.constant 0 : i32
    %c0_i32_0 = arith.constant 0 : i32
    %c0_i32_1 = arith.constant 0 : i32
    return %arg0, %c0_i32, %c0_i32_0 : i32, i32, i32
  }
  func.func @transform_1(%arg0: i32) -> (i32, i32, i32) {
    %c0_i32 = arith.constant 0 : i32
    %c0_i32_0 = arith.constant 0 : i32
    %c0_i32_1 = arith.constant 0 : i32
    %c0_i32_2 = arith.constant 0 : i32
    return %c0_i32, %c0_i32_0, %c0_i32_1 : i32, i32, i32
  }
  func.func @transform_2(%arg0: i32) -> (i32, i32) {
    %c0_i32 = arith.constant 0 : i32
    %c0_i32_0 = arith.constant 0 : i32
    %c0_i32_1 = arith.constant 0 : i32
    return %c0_i32, %c0_i32_0 : i32, i32
  }
  func.func @transform_3(%arg0: i32) -> (i32, i32, i32) {
    %c0_i32 = arith.constant 0 : i32
    %c0_i32_0 = arith.constant 0 : i32
    %c0_i32_1 = arith.constant 0 : i32
    return %arg0, %c0_i32, %c0_i32_0 : i32, i32, i32
  }
}

</mosaic_0001>

<llo_original>
// kernel: tpu_custom_call.1
$region0: #{tpu_custom_call.1}
  #allocation0 [shape = 'u32[]', space=smem, size = 0x4, offset = 0x4, fixed_abs, tag = 'smem constant byte address 0x4 - core index']
  #allocation1 [shape = 'u32[144,128]{1,0:T(1,128)}', space=vmem, size = 0x12000, scoped, tag = 'internal scratch']
  #allocation2 [shape = 'bf16[3,32,4]{2,1,0:T(8,128)(2,1)}', space=vmem, size = 0x6000, scoped, tag = 'scratch operand']
  %s0 = inlined_call_operand.vmem [shape: f32[2,16,4], index: 0, kind: input, shape index: {}]
  %s1 = inlined_call_operand.vmem [shape: bf16[3,4,16], index: 1, kind: input, shape index: {}]
  %s2 = inlined_call_operand.vmem [shape: f32[1,16], index: 2, kind: input, shape index: {}]
  %s3 = inlined_call_operand.vmem [shape: f32[2,16,8], index: 3, kind: output, shape index: {}]
  %s4 = sld [smem:[#allocation0]]
  $region22: #{tpu_custom_call.1} parent=0
    _
  %s6 = ssub.s32 1, %s4
  %s7 = scalar_select 0, %s6, %s4
  // Predicated region
  $region2: #{tpu_custom_call.1} parent=0 // pred_check
    _
  $region3: #{tpu_custom_call.1} parent=0 // pred_check_branch
    %9 = sbr.rel (0) target = $region5
  $region4: #{tpu_custom_call.1} parent=0 // pred_region
    _
  $region5: #{tpu_custom_call.1} parent=0 // pred_fallthru
    _
  // Predicated region
  $region6: #{tpu_custom_call.1} parent=0 // pred_check
    _
  $region7: #{tpu_custom_call.1} parent=0 // pred_check_branch
    %11 = sbr.rel (0) target = $region9
  $region8: #{tpu_custom_call.1} parent=0 // pred_region
    _
  $region9: #{tpu_custom_call.1} parent=0 // pred_fallthru
    _
  // Predicated region
  $region10: #{tpu_custom_call.1} parent=0 // pred_check
    _
  $region11: #{tpu_custom_call.1} parent=0 // pred_check_branch
    %13 = sbr.rel (0) target = $region13
  $region12: #{tpu_custom_call.1} parent=0 // pred_region
    _
  $region13: #{tpu_custom_call.1} parent=0 // pred_fallthru
    _
  %vm15 = vcmask 24576
  %vm16 = vsmask.f32 256
  %vm17 = vmand %vm15, %vm16
  %v18 = vld [vmem:[#allocation2] sm:$0x1]
  %v19 = vsel %vm17, 0, %v18
  %20 = vst [vmem:[#allocation2] sm:$0x1] %v19
  %v21 = vld [vmem:[%s0] sm:$0xff]
  %v22 = vld [vmem:[%s0 + $0x8] sm:$0x7f]
  %v23 = vpack.c.bf16 %v22, %v21
  %v25 = vunpack.c.l.b16 %v23
  %v26 = vunpack.c.h.b16 %v23
  %v27 = vpack.c.b16 %v25, %v25
  %v28 = vpack.c.b16 %v26, %v26
  %vm29 = vsmask.f32 4368
  %vm30 = vmor %vm16, %vm29
  %v32 = vshrl.u32 %v27, 16
  %v34 = vrot.slane %v32, 7
  %v35 = vshll.u32 %v27, 16
  %v37 = vor.u32 %v34, %v35
  %v38 = vrot.slane %v34, 4
  %v40 = vshrl.u32 %v28, 16
  %v42 = vrot.slane %v40, 7
  %v43 = vshll.u32 %v28, 16
  %v45 = vor.u32 %v42, %v43
  %v46 = vsel %vm30, %v38, %v45
  %vm49 = vcmask 27648
  %vm50 = vsmask.f32 7938
  %vm51 = vmand %vm49, %vm50
  %v52 = vld [vmem:[#allocation2] sm:$0xf]
  %v53 = vsel %vm51, %v37, %v52
  %54 = vst [vmem:[#allocation2] sm:$0xf] %v53
  %vm55 = vcmask 27648
  %56 = vst.msk [vmem:[#allocation2 + $0x4] sm:$0xf] %vm55, %v46
  %v57 = vld [vmem:[%s0] sm:$0xff]
  %v58 = vld [vmem:[%s0 + $0x8] sm:$0xff]
  %v59 = vpack.c.bf16 %v58, %v57
  %v61 = vunpack.c.l.b16 %v59
  %v62 = vunpack.c.h.b16 %v59
  %v63 = vpack.c.b16 %v61, %v61
  %v64 = vpack.c.b16 %v62, %v62
  %s67 = scalar_lea.vmem [#allocation2], 16
  %68 = vst.msk [vmem:[%s67] sm:$0xf] %vm55, %v63
  %69 = vst.msk [vmem:[%s67 + $0x4] sm:$0xf] %vm55, %v64
  %s70 = scalar_lea.vmem [#allocation2], 32
  %vm71 = vcmask 27651
  %vm72 = vsmask.f32 7950
  %vm73 = vmand %vm71, %vm72
  %v74 = vld [vmem:[%s70 + $0x4] sm:$0x8]
  %v75 = vsel %vm73, 0, %v74
  %76 = vst [vmem:[%s70 + $0x4] sm:$0x8] %v75
  %v77 = vld [vmem:[%s0 + $0x1] sm:$0xff]
  %v78 = vld [vmem:[%s0 + $0x9] sm:$0x7f]
  %v79 = vpack.c.bf16 %v78, %v77
  %v81 = vunpack.c.l.b16 %v79
  %v82 = vunpack.c.h.b16 %v79
  %v83 = vpack.c.b16 %v81, %v81
  %v84 = vpack.c.b16 %v82, %v82
  %87 = vst.msk [vmem:[%s70] sm:$0xf] %vm55, %v83
  %vm88 = vsmask.f32 3328
  %vm89 = vmand %vm49, %vm88
  %v90 = vld [vmem:[%s70 + $0x4] sm:$0xf]
  %v91 = vsel %vm89, %v84, %v90
  %92 = vst [vmem:[%s70 + $0x4] sm:$0xf] %v91
  %v93 = vld [vmem:[#allocation2 + $0x8] sm:$0x1]
  %v94 = vsel %vm17, 0, %v93
  %95 = vst [vmem:[#allocation2 + $0x8] sm:$0x1] %v94
  %s96 = scalar_lea.vmem %s0, 16
  %v97 = vld [vmem:[%s96] sm:$0xff]
  %v98 = vld [vmem:[%s96 + $0x8] sm:$0x7f]
  %v99 = vpack.c.bf16 %v98, %v97
  %v101 = vunpack.c.l.b16 %v99
  %v102 = vunpack.c.h.b16 %v99
  %v103 = vpack.c.b16 %v101, %v101
  %v104 = vpack.c.b16 %v102, %v102
  %v106 = vshrl.u32 %v103, 16
  %v108 = vrot.slane %v106, 7
  %v109 = vshll.u32 %v103, 16
  %v111 = vor.u32 %v108, %v109
  %v112 = vrot.slane %v108, 4
  %v114 = vshrl.u32 %v104, 16
  %v116 = vrot.slane %v114, 7
  %v117 = vshll.u32 %v104, 16
  %v119 = vor.u32 %v116, %v117
  %v120 = vsel %vm30, %v112, %v119
  %v123 = vld [vmem:[#allocation2 + $0x8] sm:$0xf]
  %v124 = vsel %vm51, %v111, %v123
  %125 = vst [vmem:[#allocation2 + $0x8] sm:$0xf] %v124
  %126 = vst.msk [vmem:[#allocation2 + $0xc] sm:$0xf] %vm55, %v120
  %v127 = vld [vmem:[%s96] sm:$0xff]
  %v128 = vld [vmem:[%s96 + $0x8] sm:$0xff]
  %v129 = vpack.c.bf16 %v128, %v127
  %v131 = vunpack.c.l.b16 %v129
  %v132 = vunpack.c.h.b16 %v129
  %v133 = vpack.c.b16 %v131, %v131
  %v134 = vpack.c.b16 %v132, %v132
  %137 = vst.msk [vmem:[%s67 + $0x8] sm:$0xf] %vm55, %v133
  %138 = vst.msk [vmem:[%s67 + $0xc] sm:$0xf] %vm55, %v134
  %v139 = vld [vmem:[%s70 + $0xc] sm:$0x8]
  %v140 = vsel %vm73, 0, %v139
  %141 = vst [vmem:[%s70 + $0xc] sm:$0x8] %v140
  %v142 = vld [vmem:[%s96 + $0x1] sm:$0xff]
  %v143 = vld [vmem:[%s96 + $0x9] sm:$0x7f]
  %v144 = vpack.c.bf16 %v143, %v142
  %v146 = vunpack.c.l.b16 %v144
  %v147 = vunpack.c.h.b16 %v144
  %v148 = vpack.c.b16 %v146, %v146
  %v149 = vpack.c.b16 %v147, %v147
  %152 = vst.msk [vmem:[%s70 + $0x8] sm:$0xf] %vm55, %v148
  %v153 = vld [vmem:[%s70 + $0xc] sm:$0xf]
  %v154 = vsel %vm89, %v149, %v153
  %155 = vst [vmem:[%s70 + $0xc] sm:$0xf] %v154
  %v156 = vld [vmem:[#allocation2] sm:$0xf]
  %v157 = vld [vmem:[#allocation2 + $0x4] sm:$0xf]
  %v158 = vld [vmem:[#allocation2 + $0x8] sm:$0xf]
  %v159 = vld [vmem:[#allocation2 + $0xc] sm:$0xf]
  %v160 = vld [vmem:[%s1] sm:$0x3]
  %v161 = vld [vmem:[%s67] sm:$0xf]
  %v162 = vld [vmem:[%s67 + $0x4] sm:$0xf]
  %v163 = vld [vmem:[%s67 + $0x8] sm:$0xf]
  %v164 = vld [vmem:[%s67 + $0xc] sm:$0xf]
  %s165 = scalar_lea.vmem %s1, 2
  %v166 = vld [vmem:[%s165] sm:$0x3]
  %v171 = vunpack.c.l.b16 %v161
  %v172 = vunpack.c.l.b16 %v162
  %v173 = vunpack.c.l.b16 %v163
  %v174 = vunpack.c.l.b16 %v164
  %v175 = vpack.c.b16 %v172, %v171
  %v176 = vpack.c.b16 %v174, %v173
  %vm177 = vcmask 31744
  %v179 = vsel %vm177, %v175, 0
  %v182 = vsel %vm177, %v176, 0
  %vm184 = vcmask 1041408
  %v186 = vsel %vm184, %v166, 0
  %188 = vmatprep.subr.bf16.mxu0 0
  %189 = vmatpush1.bf16.msra.mxu0 0
  %190 = vmatprep.subr.bf16.mxu0 0
  %191 = vmatpush1.bf16.msra.mxu0 0
  %192 = vmatprep.subr.bf16.mxu0 0
  %193 = vmatpush1.bf16.msra.mxu0 0
  %194 = vmatprep.subr.bf16.mxu0 0
  %195 = vmatpush1.bf16.msra.mxu0 0
  %196 = vmatprep.subr.bf16.mxu0 0
  %197 = vmatpush1.bf16.msra.mxu0 0
  %198 = vmatprep.subr.bf16.mxu0 0
  %199 = vmatpush1.bf16.msra.mxu0 0
  %200 = vmatprep.subr.bf16.mxu0 0
  %201 = vmatpush1.bf16.msra.mxu0 0
  %202 = vmatprep.subr.bf16.mxu0 0
  %203 = vmatpush1.bf16.msra.mxu0 %v186
  %204 = vmatprep.subr.bf16.mxu0 0
  %205 = vmatpush2.bf16.msra.mxu0 0
  %206 = vmatprep.subr.bf16.mxu0 0
  %207 = vmatpush2.bf16.msra.mxu0 0
  %208 = vmatprep.subr.bf16.mxu0 0
  %209 = vmatpush2.bf16.msra.mxu0 0
  %210 = vmatprep.subr.bf16.mxu0 0
  %211 = vmatpush2.bf16.msra.mxu0 0
  %212 = vmatprep.subr.bf16.mxu0 0
  %213 = vmatpush2.bf16.msra.mxu0 0
  %214 = vmatprep.subr.bf16.mxu0 0
  %215 = vmatpush2.bf16.msra.mxu0 0
  %216 = vmatprep.subr.bf16.mxu0 0
  %217 = vmatpush2.bf16.msra.mxu0 0
  %218 = vmatprep.subr.bf16.mxu0 0
  %219 = vmatpush2.bf16.msra.mxu0 0
  %220 = vmatprep.mubr.bf16.mxu0 0
  %221 = vmatmul.mubr.bf16.gmra.mxu0 %v179
  %v222 = vpop.f32.mrf.mxu0
  %v223 = vadd.f32 0.0, %v222
  %v224 = vpop.f32.mrf.mxu0
  %v225 = vpop.f32.mrf.mxu0
  %v226 = vadd.f32 0.0, %v225
  %v227 = vpop.f32.mrf.mxu0
  %228 = vmatprep.mubr.bf16.mxu0 0
  %229 = vmatmul.mubr.bf16.gmra.mxu0 %v182
  %v230 = vpop.f32.mrf.mxu0
  %v231 = vadd.f32 0.0, %v230
  %v232 = vpop.f32.mrf.mxu0
  %v233 = vpop.f32.mrf.mxu0
  %v234 = vadd.f32 0.0, %v233
  %v235 = vpop.f32.mrf.mxu0
  %236 = vdwg.mxu0
  %v241 = vunpack.c.l.b16 %v156
  %v242 = vunpack.c.l.b16 %v157
  %v243 = vunpack.c.l.b16 %v158
  %v244 = vunpack.c.l.b16 %v159
  %v245 = vpack.c.b16 %v242, %v241
  %v246 = vpack.c.b16 %v244, %v243
  %v248 = vsel %vm177, %v245, 0
  %v251 = vsel %vm177, %v246, 0
  %v254 = vsel %vm184, %v160, 0
  %256 = vmatprep.subr.bf16.mxu0 0
  %257 = vmatpush1.bf16.msra.mxu0 0
  %258 = vmatprep.subr.bf16.mxu0 0
  %259 = vmatpush1.bf16.msra.mxu0 0
  %260 = vmatprep.subr.bf16.mxu0 0
  %261 = vmatpush1.bf16.msra.mxu0 0
  %262 = vmatprep.subr.bf16.mxu0 0
  %263 = vmatpush1.bf16.msra.mxu0 0
  %264 = vmatprep.subr.bf16.mxu0 0
  %265 = vmatpush1.bf16.msra.mxu0 0
  %266 = vmatprep.subr.bf16.mxu0 0
  %267 = vmatpush1.bf16.msra.mxu0 0
  %268 = vmatprep.subr.bf16.mxu0 0
  %269 = vmatpush1.bf16.msra.mxu0 0
  %270 = vmatprep.subr.bf16.mxu0 0
  %271 = vmatpush1.bf16.msra.mxu0 %v254
  %272 = vmatprep.subr.bf16.mxu0 0
  %273 = vmatpush2.bf16.msra.mxu0 0
  %274 = vmatprep.subr.bf16.mxu0 0
  %275 = vmatpush2.bf16.msra.mxu0 0
  %276 = vmatprep.subr.bf16.mxu0 0
  %277 = vmatpush2.bf16.msra.mxu0 0
  %278 = vmatprep.subr.bf16.mxu0 0
  %279 = vmatpush2.bf16.msra.mxu0 0
  %280 = vmatprep.subr.bf16.mxu0 0
  %281 = vmatpush2.bf16.msra.mxu0 0
  %282 = vmatprep.subr.bf16.mxu0 0
  %283 = vmatpush2.bf16.msra.mxu0 0
  %284 = vmatprep.subr.bf16.mxu0 0
  %285 = vmatpush2.bf16.msra.mxu0 0
  %286 = vmatprep.subr.bf16.mxu0 0
  %287 = vmatpush2.bf16.msra.mxu0 0
  %288 = vmatprep.mubr.bf16.mxu0 0
  %289 = vmatmul.mubr.bf16.gmra.mxu0 %v248
  %v290 = vpop.f32.mrf.mxu0
  %v291 = vadd.f32 %v223, %v290
  %v292 = vpop.f32.mrf.mxu0
  %v293 = vpop.f32.mrf.mxu0
  %v294 = vadd.f32 %v226, %v293
  %v295 = vpop.f32.mrf.mxu0
  %296 = vmatprep.mubr.bf16.mxu0 0
  %297 = vmatmul.mubr.bf16.gmra.mxu0 %v251
  %v298 = vpop.f32.mrf.mxu0
  %v299 = vadd.f32 %v231, %v298
  %v300 = vpop.f32.mrf.mxu0
  %v301 = vpop.f32.mrf.mxu0
  %v302 = vadd.f32 %v234, %v301
  %v303 = vpop.f32.mrf.mxu0
  %304 = vdwg.mxu0
  %v305 = vld [vmem:[%s70] sm:$0xf]
  %v306 = vld [vmem:[%s70 + $0x4] sm:$0xf]
  %v307 = vld [vmem:[%s70 + $0x8] sm:$0xf]
  %v308 = vld [vmem:[%s70 + $0xc] sm:$0xf]
  %s309 = scalar_lea.vmem %s1, 4
  %v310 = vld [vmem:[%s309] sm:$0x3]
  %v315 = vunpack.c.l.b16 %v305
  %v316 = vunpack.c.l.b16 %v306
  %v317 = vunpack.c.l.b16 %v307
  %v318 = vunpack.c.l.b16 %v308
  %v319 = vpack.c.b16 %v316, %v315
  %v320 = vpack.c.b16 %v318, %v317
  %v322 = vsel %vm177, %v319, 0
  %v325 = vsel %vm177, %v320, 0
  %v328 = vsel %vm184, %v310, 0
  %330 = vmatprep.subr.bf16.mxu0 0
  %331 = vmatpush1.bf16.msra.mxu0 0
  %332 = vmatprep.subr.bf16.mxu0 0
  %333 = vmatpush1.bf16.msra.mxu0 0
  %334 = vmatprep.subr.bf16.mxu0 0
  %335 = vmatpush1.bf16.msra.mxu0 0
  %336 = vmatprep.subr.bf16.mxu0 0
  %337 = vmatpush1.bf16.msra.mxu0 0
  %338 = vmatprep.subr.bf16.mxu0 0
  %339 = vmatpush1.bf16.msra.mxu0 0
  %340 = vmatprep.subr.bf16.mxu0 0
  %341 = vmatpush1.bf16.msra.mxu0 0
  %342 = vmatprep.subr.bf16.mxu0 0
  %343 = vmatpush1.bf16.msra.mxu0 0
  %344 = vmatprep.subr.bf16.mxu0 0
  %345 = vmatpush1.bf16.msra.mxu0 %v328
  %346 = vmatprep.subr.bf16.mxu0 0
  %347 = vmatpush2.bf16.msra.mxu0 0
  %348 = vmatprep.subr.bf16.mxu0 0
  %349 = vmatpush2.bf16.msra.mxu0 0
  %350 = vmatprep.subr.bf16.mxu0 0
  %351 = vmatpush2.bf16.msra.mxu0 0
  %352 = vmatprep.subr.bf16.mxu0 0
  %353 = vmatpush2.bf16.msra.mxu0 0
  %354 = vmatprep.subr.bf16.mxu0 0
  %355 = vmatpush2.bf16.msra.mxu0 0
  %356 = vmatprep.subr.bf16.mxu0 0
  %357 = vmatpush2.bf16.msra.mxu0 0
  %358 = vmatprep.subr.bf16.mxu0 0
  %359 = vmatpush2.bf16.msra.mxu0 0
  %360 = vmatprep.subr.bf16.mxu0 0
  %361 = vmatpush2.bf16.msra.mxu0 0
  %362 = vmatprep.mubr.bf16.mxu0 0
  %363 = vmatmul.mubr.bf16.gmra.mxu0 %v322
  %v364 = vpop.f32.mrf.mxu0
  %v365 = vadd.f32 0.0, %v364
  %v366 = vpop.f32.mrf.mxu0
  %v367 = vpop.f32.mrf.mxu0
  %v368 = vadd.f32 0.0, %v367
  %v369 = vpop.f32.mrf.mxu0
  %370 = vmatprep.mubr.bf16.mxu0 0
  %371 = vmatmul.mubr.bf16.gmra.mxu0 %v325
  %v372 = vpop.f32.mrf.mxu0
  %v373 = vadd.f32 0.0, %v372
  %v374 = vpop.f32.mrf.mxu0
  %v375 = vpop.f32.mrf.mxu0
  %v376 = vadd.f32 0.0, %v375
  %v377 = vpop.f32.mrf.mxu0
  %378 = vdwg.mxu0
  %v379 = vadd.f32 %v291, %v365
  %v380 = vadd.f32 %v294, %v368
  %v381 = vadd.f32 %v299, %v373
  %v382 = vadd.f32 %v302, %v376
  %v383 = vld [vmem:[%s2] sm:$0x1]
  %v385 = vlaneseq
  %v386 = vshrl.u32 %v385, 7
  %v387 = vsub.s32 0, %v386
  %v388 = vrot.slane %v383, %v387
  %v390 = vadd.f32 %v379, %v388
  %v391 = vadd.f32 %v380, %v388
  %v392 = vadd.f32 %v381, %v388
  %v393 = vadd.f32 %v382, %v388
  %v394 = vmul.f32 %v390, %v390
  %v395 = vmul.f32 %v391, %v391
  %v396 = vmul.f32 %v392, %v392
  %v397 = vmul.f32 %v393, %v393
  %402 = vrot.lane.b32.xlu0 %v394, 120
  %v403 = vpop.permute.xlu0 %402
  %404 = vrot.lane.b32.xlu0 %v395, 120
  %v405 = vpop.permute.xlu0 %404
  %406 = vrot.lane.b32.xlu0 %v396, 120
  %v407 = vpop.permute.xlu0 %406
  %408 = vrot.lane.b32.xlu0 %v397, 120
  %v409 = vpop.permute.xlu0 %408
  %v414 = vadd.f32 %v394, %v403
  %v415 = vadd.f32 %v395, %v405
  %v416 = vadd.f32 %v396, %v407
  %v417 = vadd.f32 %v397, %v409
  %v418 = vrsqrt.pop %v414
  %v419 = vmul.f32 %v414, %v418
  %vm420 = vcmp.eq.f32.partialorder %v414, inf
  %v421 = vsel %vm420, %v414, %v419
  %vm422 = vcmp.eq.f32.partialorder %v414, 0.0
  %v423 = vand.u32 %v414, 2147483648
  %v424 = vsel %vm422, %v423, %v421
  %v425 = vrsqrt.pop %v415
  %v426 = vmul.f32 %v415, %v425
  %vm427 = vcmp.eq.f32.partialorder %v415, inf
  %v428 = vsel %vm427, %v415, %v426
  %vm429 = vcmp.eq.f32.partialorder %v415, 0.0
  %v430 = vand.u32 %v415, 2147483648
  %v431 = vsel %vm429, %v430, %v428
  %v432 = vrsqrt.pop %v416
  %v433 = vmul.f32 %v416, %v432
  %vm434 = vcmp.eq.f32.partialorder %v416, inf
  %v435 = vsel %vm434, %v416, %v433
  %vm436 = vcmp.eq.f32.partialorder %v416, 0.0
  %v437 = vand.u32 %v416, 2147483648
  %v438 = vsel %vm436, %v437, %v435
  %v439 = vrsqrt.pop %v417
  %v440 = vmul.f32 %v417, %v439
  %vm441 = vcmp.eq.f32.partialorder %v417, inf
  %v442 = vsel %vm441, %v417, %v440
  %vm443 = vcmp.eq.f32.partialorder %v417, 0.0
  %v444 = vand.u32 %v417, 2147483648
  %v445 = vsel %vm443, %v444, %v442
  %vm446 = vcmask 64512
  %447 = vst.msk [vmem:[%s3] sm:$0xff] %vm446, %v424
  %448 = vst.msk [vmem:[%s3 + $0x8] sm:$0xff] %vm446, %v431
  %s449 = scalar_lea.vmem %s3, 16
  %450 = vst.msk [vmem:[%s449] sm:$0xff] %vm446, %v438
  %451 = vst.msk [vmem:[%s449 + $0x8] sm:$0xff] %vm446, %v445
  // Predicated region
  $region14: #{tpu_custom_call.1} parent=0 // pred_check
    _
  $region15: #{tpu_custom_call.1} parent=0 // pred_check_branch
    %453 = sbr.rel (0) target = $region17
  $region16: #{tpu_custom_call.1} parent=0 // pred_region
    _
  $region17: #{tpu_custom_call.1} parent=0 // pred_fallthru
    _
  // Predicated region
  $region18: #{tpu_custom_call.1} parent=0 // pred_check
    _
  $region19: #{tpu_custom_call.1} parent=0 // pred_check_branch
    %455 = sbr.rel (0) target = $region21
  $region20: #{tpu_custom_call.1} parent=0 // pred_region
    _
  $region21: #{tpu_custom_call.1} parent=0 // pred_fallthru
    _

</llo_original>
